<compile_context>
chip_gen: v6e
topology: v6e:2x2x1
jax: 0.10.0
libtpu: 0.0.40
codegen_flags: <defaults>
</compile_context>

<pallas_src>
import functools

import jax
import jax.numpy as jnp
from jax.experimental import pallas as pl
from jax.experimental.pallas import tpu as pltpu


def _round_up(x, m):
    return ((x + m - 1) // m) * m


def _triplet_margin_loss_kernel(a_ref, p_ref, n_ref, o_ref, *,
                                margin, eps, n_total, tn, has_tail,
                                use_mxu_reduce):
    i = pl.program_id(0)
    last = pl.num_programs(0) - 1

    # Init the resident (1,1) accumulator on the first grid step.
    @pl.when(i == 0)
    def _():
        o_ref[...] = jnp.zeros_like(o_ref)

    # Load the current (TN, D) tiles; upcast (bf16/fp8 inputs welcome).
    a = a_ref[...].astype(jnp.float32)
    p = p_ref[...].astype(jnp.float32)
    n = n_ref[...].astype(jnp.float32)

    # PyTorch F.pairwise_distance: ||x1 - x2 + eps||_2 along the last dim.
    diff_ap = a - p + eps
    diff_an = a - n + eps
    sq_ap = diff_ap * diff_ap
    sq_an = diff_an * diff_an

    if use_mxu_reduce:
        # Row reduce on the (otherwise idle) MXU: (TN, D) @ (D, 1) -> (TN, 1).
        d = a_ref.shape[-1]
        ones = jnp.ones((d, 1), jnp.float32)
        ss_ap = jnp.dot(sq_ap, ones, preferred_element_type=jnp.float32)
        ss_an = jnp.dot(sq_an, ones, preferred_element_type=jnp.float32)
    else:
        # Exact VPU/XLU lane-reduce (default for f32 inputs).
        ss_ap = jnp.sum(sq_ap, axis=-1, keepdims=True)
        ss_an = jnp.sum(sq_an, axis=-1, keepdims=True)

    d_ap = jnp.sqrt(ss_ap)                                   # (TN, 1)
    d_an = jnp.sqrt(ss_an)                                   # (TN, 1)
    per_sample = jnp.maximum(d_ap - d_an + margin, 0.0)      # (TN, 1)

    # Accumulate a SUM into the resident output block.  Rows past the true
    # batch size (padded last tile) are masked out -- but only on the last
    # grid step, and only if a tail actually exists (static decision), so the
    # hot path never pays for the iota/compare/select.
    if has_tail:
        @pl.when(i == last)
        def _():
            row = jax.lax.broadcasted_iota(jnp.int32, (tn, 1), 0) + i * tn
            masked = jnp.where(row < n_total, per_sample, 0.0)
            o_ref[...] += jnp.sum(masked, axis=0, keepdims=True)

        @pl.when(i != last)
        def _():
            o_ref[...] += jnp.sum(per_sample, axis=0, keepdims=True)
    else:
        o_ref[...] += jnp.sum(per_sample, axis=0, keepdims=True)

    # Finalize: mean over the true batch size, once, on the last step.
    @pl.when(i == last)
    def _():
        o_ref[...] = o_ref[...] / jnp.float32(n_total)


def triplet_margin_loss(anchor, positive, negative,
                        margin=1.0, eps=1e-6,
                        vmem_input_budget_bytes=12 * 1024 * 1024,
                        max_rows_per_tile=None,
                        use_mxu_reduce=None):
    """Pallas-TPU equivalent of nn.TripletMarginLoss(margin, p=2)(a, p, n).

    Inputs are (N, D) embeddings; bf16 inputs are encouraged (they are upcast
    to f32 inside the kernel; the kernel is HBM-bound, so halving input bytes
    roughly halves wall clock, especially on v5e).

    use_mxu_reduce: None (auto: on for sub-32-bit input dtypes), or bool.
    """
    assert anchor.shape == positive.shape == negative.shape
    assert anchor.ndim == 2, "expected (N, D) embeddings"
    N, D = anchor.shape
    itemsize = jnp.dtype(anchor.dtype).itemsize

    if use_mxu_reduce is None:
        use_mxu_reduce = itemsize < 4   # bf16/fp8/int8 inputs -> MXU reduce

    # Sublane multiple from the input dtype packing: 8 (f32), 16 (bf16), 32 (i8).
    sub = max(8, 32 // itemsize)

    # Byte-budgeted row tile: 3 inputs x 2 pipeline buffers x tn x D x itemsize
    # must fit the budget (~2 MiB per input block by default).
    tn = vmem_input_budget_bytes // (3 * 2 * D * itemsize)
    tn = max(sub, (tn // sub) * sub)
    tn = min(tn, _round_up(N, sub))               # never bigger than needed
    if max_rows_per_tile is not None:             # caller override (tests/tuning)
        tn = max(sub, min(tn, _round_up(max_rows_per_tile, sub)))

    num_tiles = pl.cdiv(N, tn)
    has_tail = (N % tn) != 0

    # Explicit scoped-VMEM limit from the actual tile bytes (+ headroom),
    # capped at v7x's 64 MiB physical VMEM.
    block_bytes = tn * D * itemsize
    vmem_limit = int(min(max(3 * 2 * block_bytes + (4 << 20), 16 << 20),
                         64 << 20))

    kernel = functools.partial(
        _triplet_margin_loss_kernel,
        margin=float(margin), eps=float(eps), n_total=N, tn=tn,
        has_tail=has_tail, use_mxu_reduce=bool(use_mxu_reduce),
    )

    in_bytes = 3 * N * D * itemsize
    cost = pl.CostEstimate(
        flops=10 * N * D,           # diffs, squares, and the row reduce
        transcendentals=2 * N,      # two sqrt per row
        bytes_accessed=in_bytes + 4,
    )

    out = pl.pallas_call(
        kernel,
        out_shape=jax.ShapeDtypeStruct((1, 1), jnp.float32),
        grid_spec=pltpu.PrefetchScalarGridSpec(
            num_scalar_prefetch=0,
            grid=(num_tiles,),
            in_specs=[
                pl.BlockSpec((tn, D), lambda i: (i, 0)),
                pl.BlockSpec((tn, D), lambda i: (i, 0)),
                pl.BlockSpec((tn, D), lambda i: (i, 0)),
            ],
            out_specs=pl.BlockSpec((1, 1), lambda i: (0, 0)),
        ),
        compiler_params=pltpu.CompilerParams(
            dimension_semantics=("arbitrary",),   # reduction axis (accumulator)
            vmem_limit_bytes=vmem_limit,
        ),
        cost_estimate=cost,
    )(anchor, positive, negative)
    return out[0, 0]


def _reference(anchor, positive, negative, margin=1.0, eps=1e-6):
    a = anchor.astype(jnp.float32)
    p = positive.astype(jnp.float32)
    n = negative.astype(jnp.float32)
    d_ap = jnp.sqrt(jnp.sum((a - p + eps) ** 2, axis=-1))
    d_an = jnp.sqrt(jnp.sum((a - n + eps) ** 2, axis=-1))
    return jnp.mean(jnp.maximum(d_ap - d_an + margin, 0.0))


if __name__ == "__main__":
    key = jax.random.PRNGKey(0)

    # Case 1: f32, lane-aligned batch -> single tile, no tail mask anywhere.
    ka, kp, kn = jax.random.split(key, 3)
    N, D = 8, 128
    a1 = jax.random.normal(ka, (N, D), dtype=jnp.float32)
    p1 = jax.random.normal(kp, (N, D), dtype=jnp.float32)
    n1 = jax.random.normal(kn, (N, D), dtype=jnp.float32)
    loss1 = jax.block_until_ready(triplet_margin_loss(a1, p1, n1))
    ref1 = _reference(a1, p1, n1)
    assert jnp.allclose(loss1, ref1, atol=1e-5, rtol=1e-5), (loss1, ref1)

    # Case 2: f32, N % tile != 0 -> multi-tile grid, mask applied on the last
    # grid step only (exact VPU/XLU reduce path, tight tolerance).
    kb, kc, kd = jax.random.split(jax.random.fold_in(key, 1), 3)
    N2, D2 = 12, 128
    a2 = jax.random.normal(kb, (N2, D2), dtype=jnp.float32)
    p2 = jax.random.normal(kc, (N2, D2), dtype=jnp.float32)
    n2 = jax.random.normal(kd, (N2, D2), dtype=jnp.float32)
    loss2 = jax.block_until_ready(
        triplet_margin_loss(a2, p2, n2, max_rows_per_tile=8))  # 2 tiles, 4 padded rows
    ref2 = _reference(a2, p2, n2)
    assert jnp.allclose(loss2, ref2, atol=1e-5, rtol=1e-5), (loss2, ref2)

    # Case 3: bf16 inputs -> 16-row sublane rounding + MXU row-reduce (auto),
    # multi-tile with a padded tail.  Tolerance is loose because the MXU may
    # use reduced-precision passes for f32 operands (commensurate with bf16
    # input quantization anyway).
    ke, kf, kg = jax.random.split(jax.random.fold_in(key, 2), 3)
    N3, D3 = 40, 128
    a3 = jax.random.normal(ke, (N3, D3), dtype=jnp.float32).astype(jnp.bfloat16)
    p3 = jax.random.normal(kf, (N3, D3), dtype=jnp.float32).astype(jnp.bfloat16)
    n3 = jax.random.normal(kg, (N3, D3), dtype=jnp.float32).astype(jnp.bfloat16)
    loss3 = jax.block_until_ready(
        triplet_margin_loss(a3, p3, n3, max_rows_per_tile=16))  # 3 tiles, 8 padded rows
    ref3 = _reference(a3, p3, n3)
    assert jnp.allclose(loss3, ref3, atol=5e-2, rtol=5e-2), (loss3, ref3)

    # Case 4: f32 with the MXU reduce forced on (the v7x recommendation).
    loss4 = jax.block_until_ready(
        triplet_margin_loss(a2, p2, n2, max_rows_per_tile=8, use_mxu_reduce=True))
    assert jnp.allclose(loss4, ref2, atol=5e-2, rtol=5e-2), (loss4, ref2)

    print("KERNEL_OK")
</pallas_src>

<mosaic_0001>
module attributes {stable_mosaic.version = 11 : i64} {
  func.func @_triplet_margin_loss_kernel(%arg0: i32, %arg1: memref<8x128xf32, #tpu.memory_space<vmem>>, %arg2: memref<8x128xf32, #tpu.memory_space<vmem>>, %arg3: memref<8x128xf32, #tpu.memory_space<vmem>>, %arg4: memref<1x1xf32, #tpu.memory_space<vmem>>) attributes {dimension_semantics = [#tpu.dimension_semantics<arbitrary>], iteration_bounds = array<i64: 1>, scalar_prefetch = 0 : i64, scratch_operands = 0 : i64, tpu.core_type = #tpu.core_type<tc>, window_params = [{transform_indices = @transform_0, window_bounds = array<i64: 8, 128>}, {transform_indices = @transform_1, window_bounds = array<i64: 8, 128>}, {transform_indices = @transform_2, window_bounds = array<i64: 8, 128>}, {pipeline_mode = #tpu.pipeline_mode<synchronous>, transform_indices = @transform_3, window_bounds = array<i64: 1, 1>}]} {
    %c0_i32 = arith.constant 0 : i32
    %0 = arith.cmpi eq, %arg0, %c0_i32 : i32
    %1 = arith.extui %0 : i1 to i32
    %c0_i32_0 = arith.constant 0 : i32
    %2 = arith.cmpi ne, %1, %c0_i32_0 : i32
    scf.if %2 {
      %cst_18 = arith.constant 0.000000e+00 : f32
      %33 = vector.broadcast %cst_18 : f32 to vector<1x1xf32>
      %c0_19 = arith.constant 0 : index
      %c0_20 = arith.constant 0 : index
      %34 = vector.load %arg4[%c0_19, %c0_20] : memref<1x1xf32, #tpu.memory_space<vmem>>, vector<1x1xf32>
      tpu.vector_store %arg4[%c0_19, %c0_20], %33 {strides = array<i32>} : memref<1x1xf32, #tpu.memory_space<vmem>>, vector<1x1xf32>,
    } else {
    }
    %c0 = arith.constant 0 : index
    %c0_1 = arith.constant 0 : index
    %3 = vector.load %arg1[%c0, %c0_1] : memref<8x128xf32, #tpu.memory_space<vmem>>, vector<8x128xf32>
    %c0_2 = arith.constant 0 : index
    %c0_3 = arith.constant 0 : index
    %4 = vector.load %arg2[%c0_2, %c0_3] : memref<8x128xf32, #tpu.memory_space<vmem>>, vector<8x128xf32>
    %c0_4 = arith.constant 0 : index
    %c0_5 = arith.constant 0 : index
    %5 = vector.load %arg3[%c0_4, %c0_5] : memref<8x128xf32, #tpu.memory_space<vmem>>, vector<8x128xf32>
    %6 = arith.subf %3, %4 : vector<8x128xf32>
    %cst = arith.constant 9.99999997E-7 : f32
    %7 = vector.broadcast %cst : f32 to vector<8x128xf32>
    %8 = arith.addf %6, %7 : vector<8x128xf32>
    %9 = arith.subf %3, %5 : vector<8x128xf32>
    %cst_6 = arith.constant 9.99999997E-7 : f32
    %10 = vector.broadcast %cst_6 : f32 to vector<8x128xf32>
    %11 = arith.addf %9, %10 : vector<8x128xf32>
    %12 = arith.mulf %8, %8 : vector<8x128xf32>
    %13 = arith.mulf %11, %11 : vector<8x128xf32>
    %cst_7 = arith.constant dense<0.000000e+00> : vector<8xf32>
    %14 = vector.multi_reduction <add>, %12, %cst_7 [1] : vector<8x128xf32> to vector<8xf32>
    %15 = vector.shape_cast %14 : vector<8xf32> to vector<8x1xf32>
    %cst_8 = arith.constant dense<0.000000e+00> : vector<8xf32>
    %16 = vector.multi_reduction <add>, %13, %cst_8 [1] : vector<8x128xf32> to vector<8xf32>
    %17 = vector.shape_cast %16 : vector<8xf32> to vector<8x1xf32>
    %18 = math.sqrt %15 : vector<8x1xf32>
    %19 = math.sqrt %17 : vector<8x1xf32>
    %20 = arith.subf %18, %19 : vector<8x1xf32>
    %cst_9 = arith.constant 1.000000e+00 : f32
    %21 = vector.broadcast %cst_9 : f32 to vector<8x1xf32>
    %22 = arith.addf %20, %21 : vector<8x1xf32>
    %cst_10 = arith.constant 0.000000e+00 : f32
    %23 = vector.broadcast %cst_10 : f32 to vector<8x1xf32>
    %24 = arith.maximumf %22, %23 : vector<8x1xf32>
    %c0_11 = arith.constant 0 : index
    %c0_12 = arith.constant 0 : index
    %25 = vector.load %arg4[%c0_11, %c0_12] : memref<1x1xf32, #tpu.memory_space<vmem>>, vector<1x1xf32>
    %cst_13 = arith.constant dense<0.000000e+00> : vector<1xf32>
    %26 = vector.multi_reduction <add>, %24, %cst_13 [0] : vector<8x1xf32> to vector<1xf32>
    %27 = vector.shape_cast %26 : vector<1xf32> to vector<1x1xf32>
    %28 = arith.addf %25, %27 : vector<1x1xf32>
    %c0_14 = arith.constant 0 : index
    %c0_15 = arith.constant 0 : index
    %29 = vector.load %arg4[%c0_14, %c0_15] : memref<1x1xf32, #tpu.memory_space<vmem>>, vector<1x1xf32>
    tpu.vector_store %arg4[%c0_14, %c0_15], %28 {strides = array<i32>} : memref<1x1xf32, #tpu.memory_space<vmem>>, vector<1x1xf32>,
    %c0_i32_16 = arith.constant 0 : i32
    %30 = arith.cmpi eq, %arg0, %c0_i32_16 : i32
    %31 = arith.extui %30 : i1 to i32
    %c0_i32_17 = arith.constant 0 : i32
    %32 = arith.cmpi ne, %31, %c0_i32_17 : i32
    scf.if %32 {
      %c0_18 = arith.constant 0 : index
      %c0_19 = arith.constant 0 : index
      %33 = vector.load %arg4[%c0_18, %c0_19] : memref<1x1xf32, #tpu.memory_space<vmem>>, vector<1x1xf32>
      %cst_20 = arith.constant 8.000000e+00 : f32
      %34 = vector.broadcast %cst_20 : f32 to vector<1x1xf32>
      %35 = arith.divf %33, %34 : vector<1x1xf32>
      %c0_21 = arith.constant 0 : index
      %c0_22 = arith.constant 0 : index
      %36 = vector.load %arg4[%c0_21, %c0_22] : memref<1x1xf32, #tpu.memory_space<vmem>>, vector<1x1xf32>
      tpu.vector_store %arg4[%c0_21, %c0_22], %35 {strides = array<i32>} : memref<1x1xf32, #tpu.memory_space<vmem>>, vector<1x1xf32>,
    } else {
    }
    return
  }
  func.func @transform_0(%arg0: i32) -> (i32, i32) {
    %c0_i32 = arith.constant 0 : i32
    %c0_i32_0 = arith.constant 0 : i32
    return %arg0, %c0_i32 : i32, i32
  }
  func.func @transform_1(%arg0: i32) -> (i32, i32) {
    %c0_i32 = arith.constant 0 : i32
    %c0_i32_0 = arith.constant 0 : i32
    return %arg0, %c0_i32 : i32, i32
  }
  func.func @transform_2(%arg0: i32) -> (i32, i32) {
    %c0_i32 = arith.constant 0 : i32
    %c0_i32_0 = arith.constant 0 : i32
    return %arg0, %c0_i32 : i32, i32
  }
  func.func @transform_3(%arg0: i32) -> (i32, i32) {
    %c0_i32 = arith.constant 0 : i32
    %c0_i32_0 = arith.constant 0 : i32
    %c0_i32_1 = arith.constant 0 : i32
    return %c0_i32, %c0_i32_0 : i32, i32
  }
}

</mosaic_0001>

<llo_original>
// kernel: tpu_custom_call.1
$region0: #{tpu_custom_call.1}
  #allocation0 [shape = 'u32[]', space=smem, size = 0x4, offset = 0x4, fixed_abs, tag = 'smem constant byte address 0x4 - core index']
  #allocation1 [shape = 'u32[144,128]{1,0:T(1,128)}', space=vmem, size = 0x12000, scoped, tag = 'internal scratch']
  %s0 = inlined_call_operand.hbm [shape: f32[8,128], index: 0, kind: input, shape index: {}]
  %s1 = inlined_call_operand.hbm [shape: f32[8,128], index: 1, kind: input, shape index: {}]
  %s2 = inlined_call_operand.hbm [shape: f32[8,128], index: 2, kind: input, shape index: {}]
  %s3 = inlined_call_operand.hbm [shape: f32[1,1], index: 3, kind: output, shape index: {}]
  %s4 = sld [smem:[#allocation0]]
  $region42: #{tpu_custom_call.1} parent=0
    _
  %s6 = ssub.s32 1, %s4
  %s7 = scalar_select 0, %s6, %s4
  $region1: #{tpu_custom_call.1} parent=0
    #allocation2 [shape = 'u8[4096]{0}', space=vmem, size = 0x1000, scoped, tag = 'input window, operand 0, single buffered']
    #allocation3 [shape = 's32[1]{0}', space=sflag, size = 0x4, scoped, tag = 'scoped memory for tpu_custom_call.1']
    #allocation4 [shape = 's32[1]{0}', space=sflag, size = 0x4, scoped, tag = 'scoped memory for tpu_custom_call.1']
    #allocation5 [shape = 'u8[4096]{0}', space=vmem, size = 0x1000, scoped, tag = 'input window, operand 1, single buffered']
    #allocation6 [shape = 's32[1]{0}', space=sflag, size = 0x4, scoped, tag = 'scoped memory for tpu_custom_call.1']
    #allocation7 [shape = 'u8[4096]{0}', space=vmem, size = 0x1000, scoped, tag = 'input window, operand 2, single buffered']
    #allocation8 [shape = 'u8[512]{0}', space=vmem, size = 0x400, scoped, tag = 'output window, operand 0, single buffered']
    %8 = vsyncpa [#allocation3], 0
    %9 = vsyncpa [#allocation6], 0
    %10 = vsyncpa [#allocation4], 0
    // Predicated region
    $region2: #{tpu_custom_call.1} parent=1 // pred_check
      _
    $region3: #{tpu_custom_call.1} parent=1 // pred_check_branch
      %12 = sbr.rel (0) target = $region5
    $region4: #{tpu_custom_call.1} parent=1 // pred_region
      %s14 = ssub.s32 128, 128
      %15 = vsyncadd [#allocation3], %s14
      %s17 = sshll.u32 [#allocation2], 4
      %s18 = int_to_ptr.vmem [resolvable:$true] %s17
      %20 = dma.hbm_to_vmem [thread:$0]  %s0, 128, %s18, [#allocation3]
    $region5: #{tpu_custom_call.1} parent=1 // pred_fallthru
      _
    // Predicated region
    $region6: #{tpu_custom_call.1} parent=1 // pred_check
      _
    $region7: #{tpu_custom_call.1} parent=1 // pred_check_branch
      %22 = sbr.rel (0) target = $region9
    $region8: #{tpu_custom_call.1} parent=1 // pred_region
      %s24 = ssub.s32 128, 128
      %25 = vsyncadd [#allocation6], %s24
      %s27 = sshll.u32 [#allocation5], 4
      %s28 = int_to_ptr.vmem [resolvable:$true] %s27
      %30 = dma.hbm_to_vmem [thread:$0]  %s1, 128, %s28, [#allocation6]
    $region9: #{tpu_custom_call.1} parent=1 // pred_fallthru
      _
    // Predicated region
    $region10: #{tpu_custom_call.1} parent=1 // pred_check
      _
    $region11: #{tpu_custom_call.1} parent=1 // pred_check_branch
      %32 = sbr.rel (0) target = $region13
    $region12: #{tpu_custom_call.1} parent=1 // pred_region
      %s34 = ssub.s32 128, 128
      %35 = vsyncadd [#allocation6], %s34
      %s37 = sshll.u32 [#allocation7], 4
      %s38 = int_to_ptr.vmem [resolvable:$true] %s37
      %40 = dma.hbm_to_vmem [thread:$0]  %s2, 128, %s38, [#allocation6]
    $region13: #{tpu_custom_call.1} parent=1 // pred_fallthru
      _
    // Predicated region
    $region14: #{tpu_custom_call.1} parent=1 // pred_check
      _
    $region15: #{tpu_custom_call.1} parent=1 // pred_check_branch
      %42 = sbr.rel (0) target = $region17
    $region16: #{tpu_custom_call.1} parent=1 // pred_region
      %43 = dma.done [#allocation3], 128
    $region17: #{tpu_custom_call.1} parent=1 // pred_fallthru
      _
    // Predicated region
    $region18: #{tpu_custom_call.1} parent=1 // pred_check
      _
    $region19: #{tpu_custom_call.1} parent=1 // pred_check_branch
      %45 = sbr.rel (0) target = $region21
    $region20: #{tpu_custom_call.1} parent=1 // pred_region
      %46 = dma.done [#allocation6], 128
    $region21: #{tpu_custom_call.1} parent=1 // pred_fallthru
      _
    // Predicated region
    $region22: #{tpu_custom_call.1} parent=1 // pred_check
      _
    $region23: #{tpu_custom_call.1} parent=1 // pred_check_branch
      %48 = sbr.rel (0) target = $region25
    $region24: #{tpu_custom_call.1} parent=1 // pred_region
      %49 = dma.done [#allocation6], 128
    $region25: #{tpu_custom_call.1} parent=1 // pred_fallthru
      _
    %p50 = scmp.eq.s32.totalorder 0, 0
    // Predicated region
    $region26: #{tpu_custom_call.1} parent=1 // pred_check
      %p51 = pneg %p50
    $region27: #{tpu_custom_call.1} parent=1 // pred_check_branch
      %53 = sbr.rel (%p51) target = $region29
    $region28: #{tpu_custom_call.1} parent=1 // pred_region
      %vm54 = vcmask 0
      %55 = vst.msk [vmem:[#allocation8] sm:$0x1] %vm54, 0.0
    $region29: #{tpu_custom_call.1} parent=1 // pred_fallthru
      _
    %v56 = vld [vmem:[#allocation2] sm:$0xff]
    %v57 = vld [vmem:[#allocation5] sm:$0xff]
    %v58 = vld [vmem:[#allocation7] sm:$0xff]
    %v59 = vsub.f32 %v56, %v57
    %v60 = vadd.f32 %v59, 1e-06
    %v61 = vsub.f32 %v56, %v58
    %v62 = vadd.f32 %v61, 1e-06
    %v63 = vmul.f32 %v60, %v60
    %v64 = vmul.f32 %v62, %v62
    %65 = vadd.xlane.f32.xlu0 %v63
    %v66 = vpop.xlane.xlu0 %65
    %67 = vadd.xlane.f32.xlu0 %v64
    %v68 = vpop.xlane.xlu0 %67
    %v69 = vrsqrt.pop %v66
    %v70 = vmul.f32 %v66, %v69
    %vm71 = vcmp.eq.f32.partialorder %v66, inf
    %v72 = vsel %vm71, %v66, %v70
    %vm73 = vcmp.eq.f32.partialorder %v66, 0.0
    %v74 = vand.u32 %v66, 2147483648
    %v75 = vsel %vm73, %v74, %v72
    %v76 = vrsqrt.pop %v68
    %v77 = vmul.f32 %v68, %v76
    %vm78 = vcmp.eq.f32.partialorder %v68, inf
    %v79 = vsel %vm78, %v68, %v77
    %vm80 = vcmp.eq.f32.partialorder %v68, 0.0
    %v81 = vand.u32 %v68, 2147483648
    %v82 = vsel %vm80, %v81, %v79
    %v83 = vsub.f32 %v75, %v82
    %v84 = vadd.f32 %v83, 1.0
    %v85 = vmax.f32 %v84, 0.0
    %v86 = vld [vmem:[#allocation8] sm:$0x1]
    %v87 = vrot.slane %v85, 4
    %v88 = vadd.f32 %v85, %v87
    %v89 = vrot.slane %v88, 2
    %v90 = vadd.f32 %v88, %v89
    %v91 = vrot.slane %v90, 1
    %v92 = vadd.f32 %v90, %v91
    %v93 = vadd.f32 %v86, %v92
    %vm94 = vcmask 0
    %95 = vst.msk [vmem:[#allocation8] sm:$0x1] %vm94, %v93
    // Predicated region
    $region30: #{tpu_custom_call.1} parent=1 // pred_check
      %p96 = pneg %p50
    $region31: #{tpu_custom_call.1} parent=1 // pred_check_branch
      %98 = sbr.rel (%p96) target = $region33
    $region32: #{tpu_custom_call.1} parent=1 // pred_region
      %v99 = vld [vmem:[#allocation8] sm:$0x1]
      %v100 = vrcp.pop 8.0
      %v101 = vmul.f32 %v99, %v100
      %102 = vst.msk [vmem:[#allocation8] sm:$0x1] %vm94, %v101
    $region33: #{tpu_custom_call.1} parent=1 // pred_fallthru
      _
    // Predicated region
    $region34: #{tpu_custom_call.1} parent=1 // pred_check
      _
    $region35: #{tpu_custom_call.1} parent=1 // pred_check_branch
      %104 = sbr.rel (0) target = $region37
    $region36: #{tpu_custom_call.1} parent=1 // pred_region
      %s106 = ssub.s32 16, 16
      %107 = vsyncadd [#allocation4], %s106
      %s109 = sshll.u32 [#allocation8], 4
      %s110 = int_to_ptr.vmem [resolvable:$true] %s109
      %112 = dma.vmem_to_hbm [thread:$0]  %s110, 16, %s3, [#allocation4]
    $region37: #{tpu_custom_call.1} parent=1 // pred_fallthru
      _
    // Predicated region
    $region38: #{tpu_custom_call.1} parent=1 // pred_check
      _
    $region39: #{tpu_custom_call.1} parent=1 // pred_check_branch
      %114 = sbr.rel (0) target = $region41
    $region40: #{tpu_custom_call.1} parent=1 // pred_region
      %115 = dma.done [#allocation4], 16
    $region41: #{tpu_custom_call.1} parent=1 // pred_fallthru
      _
    %116 = vsyncpa [#allocation3], 1
    %117 = vsyncpa [#allocation6], 1
    %118 = vsyncpa [#allocation4], 1

</llo_original>
